<compile_context>
chip_gen: v6e
topology: v6e:2x2x1
jax: 0.10.0
libtpu: 0.0.40
codegen_flags: <defaults>
</compile_context>

<pallas_src>
import functools

import jax
import jax.numpy as jnp
from jax.experimental import pallas as pl
from jax.experimental.pallas import tpu as pltpu


# ----------------------------------------------------------------------------
# Helpers (plain-JAX / Python glue, executed once in the wrapper)
# ----------------------------------------------------------------------------
def _round_up(a, b):
    return (a + b - 1) // b * b


def _pick_group_size(d, m1, max_lanes=512):
    """Largest divisor g of d with g*m1 <= max_lanes; prefer lane-dense g*m1."""
    best = 1
    for g in range(1, d + 1):
        if d % g == 0 and g * m1 <= max_lanes:
            best = g
    for g in range(1, d + 1):
        if d % g == 0 and g * m1 <= max_lanes and (g * m1) % 128 == 0:
            best = g
    # TODO(synk): for prime d with no divisor giving a multiple-of-128 lane
    # width, pad d with zero variables instead of accepting ragged lanes
    # (matters most on v5e with its single vst slot).
    return best


def _group_block_diag(w, g):
    """[d, m_in, m_out] -> per-group block diagonal [d//g, g*m_in, g*m_out]."""
    d, mi, mo = w.shape
    G = d // g
    wg = w.reshape(G, g, mi, mo)
    eye = jnp.eye(g, dtype=w.dtype)
    blk = eye[None, :, None, :, None] * wg[:, :, :, None, :]   # [G,g,mi,g,mo]
    return blk.reshape(G, g * mi, g * mo)


# ----------------------------------------------------------------------------
# Pallas kernel.  For one (batch-tile, variable-group) grid point:
#   h = x @ W1_g + b1_g ; repeat (sigmoid -> h @ Wblk_g + b_g)
# The last layer's weights are pre-scattered over all d output columns, so the
# final h is a [tn, d] contribution (zeros outside this group's columns) that
# is accumulated into the output-resident (tn, d) block.
# ----------------------------------------------------------------------------
def _notears_mlp_kernel(num_lc, x_ref, w1_ref, b1_ref, *refs):
    lc_refs = refs[:2 * num_lc]
    o_ref = refs[-1]
    j = pl.program_id(1)                     # group index (inner, "arbitrary")

    # fc1_pos(x) - fc1_neg(x): weights folded & pre-transposed in the wrapper.
    h = jnp.dot(x_ref[...], w1_ref[...],
                preferred_element_type=jnp.float32) + b1_ref[...]

    for l in range(num_lc):
        w = lc_refs[2 * l][...]              # [g*m_in, g*m_out]  (or [.., d])
        b = lc_refs[2 * l + 1][...]          # [1, g*m_out]       (or [1, d])
        # sigmoid(h) == 0.5 * (tanh(0.5*h) + 1): single EUP op, no VALU divide.
        h = 0.5 * (jnp.tanh(0.5 * h) + 1.0)
        h = jnp.dot(h.astype(w.dtype), w,
                    preferred_element_type=jnp.float32) + b

    contrib = h.astype(o_ref.dtype)          # [tn, d] (lane-dense)

    @pl.when(j == 0)
    def _init():
        o_ref[...] = contrib

    @pl.when(j > 0)
    def _accumulate():
        o_ref[...] = o_ref[...] + contrib


# ----------------------------------------------------------------------------
# Wrapper
# ----------------------------------------------------------------------------
def notears_mlp_forward(x, params, dims, *, tile_n=512, compute_dtype=None,
                        group_size=None):
    n, d = x.shape
    assert len(dims) >= 2 and d == dims[0] and dims[-1] == 1
    m1 = dims[1]
    num_lc = len(dims) - 2
    out_dtype = x.dtype
    if compute_dtype is None:
        compute_dtype = x.dtype
    f32 = jnp.float32

    if num_lc == 0:
        g = d                                   # fc1 output IS the output
    elif group_size is not None:
        assert d % group_size == 0
        g = group_size
    else:
        g = _pick_group_size(d, m1)
    G = d // g

    # ---- batch tiling ------------------------------------------------------
    n_pad = _round_up(max(n, 1), 8)
    tn = min(tile_n, n_pad)
    if n_pad // tn < 2 and n_pad >= 16:
        tn = _round_up((n_pad + 1) // 2, 8)     # >=2 parallel steps (v7x)

    def _vmem_est(tn_):
        wsz = jnp.dtype(compute_dtype).itemsize
        osz = jnp.dtype(out_dtype).itemsize
        b = 2 * tn_ * d * (wsz + osz)                       # x + out blocks
        b += 2 * d * g * m1 * wsz + 2 * g * m1 * 4          # W1 slab + b1
        for l in range(num_lc):
            mi, mo = dims[l + 1], dims[l + 2]
            cols = d if l == num_lc - 1 else g * mo
            b += 2 * g * mi * cols * wsz + 2 * cols * 4
        widest = max([g * m1, d] + [g * dims[l + 1] for l in range(num_lc)])
        b += 4 * tn_ * widest * 4                            # live intermediates
        return b

    while _vmem_est(tn) > 40 * 1024 * 1024 and tn > 128:
        tn = max(128, _round_up(tn // 2, 8))
    n_pad = _round_up(n_pad, tn)
    vmem_limit = int(min(max(2 * _vmem_est(tn), 32 * 1024 * 1024),
                         56 * 1024 * 1024))    # stay under v7x's 64 MiB VMEM

    if n_pad == n:
        x_pad = x.astype(compute_dtype)
    else:
        x_pad = jnp.zeros((n_pad, d), compute_dtype).at[:n].set(
            x.astype(compute_dtype))

    # ---- weights: fold fc1_pos - fc1_neg, pre-transpose, group ------------
    w1 = (params["fc1_pos_w"] - params["fc1_neg_w"]).astype(f32).T   # [d, d*m1]
    b1 = (params["fc1_pos_b"] - params["fc1_neg_b"]).astype(f32)     # [d*m1]
    w1g = w1.reshape(d, G, g * m1).transpose(1, 0, 2).astype(compute_dtype)
    b1g = b1.reshape(G, 1, g * m1)                                   # bias f32

    inputs = [x_pad, w1g, b1g]
    in_specs = [
        pl.BlockSpec((tn, d), lambda i, j: (i, 0)),               # x: per batch
        pl.BlockSpec((None, d, g * m1), lambda i, j: (j, 0, 0)),  # W1 group
        pl.BlockSpec((None, 1, g * m1), lambda i, j: (j, 0, 0)),  # b1 group
    ]

    group_of_col = (jnp.arange(d) // g)[None, :] == jnp.arange(G)[:, None]
    for l in range(num_lc):
        m_in, m_out = dims[l + 1], dims[l + 2]
        w_blk = _group_block_diag(params["fc2_w"][l].astype(f32), g)
        b_l = params["fc2_b"][l].astype(f32)                         # [d, m_out]
        if l == num_lc - 1:
            # m_out == 1: scatter each group's g output columns to their global
            # positions among d -> lane-dense output contribution.
            eyeG = jnp.eye(G, dtype=f32)
            w_blk = (eyeG[:, None, :, None] * w_blk[:, :, None, :]
                     ).reshape(G, g * m_in, d)
            b_blk = (group_of_col.astype(f32) * b_l.reshape(d)[None, :]
                     ).reshape(G, 1, d)
            cols = d
        else:
            b_blk = b_l.reshape(G, 1, g * m_out)
            cols = g * m_out
        inputs.append(w_blk.astype(compute_dtype))
        inputs.append(b_blk)
        in_specs.append(pl.BlockSpec((None, g * m_in, cols),
                                     lambda i, j: (j, 0, 0)))
        in_specs.append(pl.BlockSpec((None, 1, cols), lambda i, j: (j, 0, 0)))

    out = pl.pallas_call(
        functools.partial(_notears_mlp_kernel, num_lc),
        out_shape=jax.ShapeDtypeStruct((n_pad, d), out_dtype),
        grid=(n_pad // tn, G),
        in_specs=in_specs,
        out_specs=pl.BlockSpec((tn, d), lambda i, j: (i, 0)),
        compiler_params=pltpu.CompilerParams(
            dimension_semantics=("parallel", "arbitrary"),
            vmem_limit_bytes=vmem_limit),
    )(*inputs)

    return out[:n]


# ----------------------------------------------------------------------------
# Pure-JAX reference (mirrors the PyTorch module's forward exactly).
# ----------------------------------------------------------------------------
def notears_mlp_reference(x, params, dims):
    d = dims[0]
    w1 = params["fc1_pos_w"] - params["fc1_neg_w"]      # [d*m1, d]
    b1 = params["fc1_pos_b"] - params["fc1_neg_b"]      # [d*m1]
    h = x @ w1.T + b1                                   # fc1_pos(x) - fc1_neg(x)
    h = h.reshape(-1, d, dims[1])                       # view(-1, d, m1)
    for l in range(len(dims) - 2):
        h = jax.nn.sigmoid(h)
        h = jnp.einsum("ndi,dio->ndo", h, params["fc2_w"][l]) \
            + params["fc2_b"][l][None]
    return h[..., 0]                                    # squeeze(dim=2)


# ----------------------------------------------------------------------------
# Deterministic parameter construction (synthetic; shapes follow __init__).
# ----------------------------------------------------------------------------
def make_params(key, dims, dtype=jnp.float32):
    d, m1 = dims[0], dims[1]
    keys = jax.random.split(key, 4 + 2 * max(len(dims) - 2, 1))
    s1 = 1.0 / jnp.sqrt(jnp.asarray(d, dtype))
    params = {
        "fc1_pos_w": jax.random.uniform(keys[0], (d * m1, d), dtype, -s1, s1),
        "fc1_neg_w": jax.random.uniform(keys[1], (d * m1, d), dtype, -s1, s1),
        "fc1_pos_b": jax.random.uniform(keys[2], (d * m1,), dtype, -s1, s1),
        "fc1_neg_b": jax.random.uniform(keys[3], (d * m1,), dtype, -s1, s1),
        "fc2_w": [],
        "fc2_b": [],
    }
    for l in range(len(dims) - 2):
        m_in, m_out = dims[l + 1], dims[l + 2]
        s = 1.0 / jnp.sqrt(jnp.asarray(m_in, dtype))
        params["fc2_w"].append(
            jax.random.uniform(keys[4 + 2 * l], (d, m_in, m_out), dtype, -s, s))
        params["fc2_b"].append(
            jax.random.uniform(keys[5 + 2 * l], (d, m_out), dtype, -s, s))
    return params


if __name__ == "__main__":
    master = jax.random.PRNGKey(0)

    # (dims, n, compute_dtype, forced group size, atol, rtol)
    cases = [
        ([8, 16, 8, 1], 32, None, None, 1e-4, 1e-4),      # f32, G=1, lane-dense
        ([24, 16, 8, 1], 40, None, 8, 1e-4, 1e-4),        # f32, G=3, padding
        ([8, 16, 8, 1], 32, jnp.bfloat16, None, 1e-1, 1e-1),  # bf16 MXU operands
    ]

    for idx, (dims, n, cdt, gsz, atol, rtol) in enumerate(cases):
        k_x, k_p = jax.random.split(jax.random.fold_in(master, idx))
        x = jax.random.normal(k_x, (n, dims[0]), dtype=jnp.float32)
        params = make_params(k_p, dims)

        out = notears_mlp_forward(x, params, dims, compute_dtype=cdt,
                                  group_size=gsz)
        out = jax.block_until_ready(out)

        ref = notears_mlp_reference(x, params, dims)
        assert out.shape == (n, dims[0]), (idx, out.shape)
        assert jnp.allclose(out, ref, atol=atol, rtol=rtol), (
            f"case {idx}: max abs err = {jnp.max(jnp.abs(out - ref))}")

    # TODO(synk): h_func (trace of matrix exponential of the weight-derived
    # adjacency) and the regularizers (l2_reg, fc1_l1_reg, fc1_to_adj) are
    # training-time reductions, not part of forward(); omitted.
    print("KERNEL_OK")
</pallas_src>

<mosaic_0001>
module attributes {stable_mosaic.version = 11 : i64} {
  func.func @_notears_mlp_kernel(%arg0: i32, %arg1: i32, %arg2: memref<16x8xf32, #tpu.memory_space<vmem>>, %arg3: memref<1x8x128xf32, #tpu.memory_space<vmem>>, %arg4: memref<1x1x128xf32, #tpu.memory_space<vmem>>, %arg5: memref<1x128x64xf32, #tpu.memory_space<vmem>>, %arg6: memref<1x1x64xf32, #tpu.memory_space<vmem>>, %arg7: memref<1x64x8xf32, #tpu.memory_space<vmem>>, %arg8: memref<1x1x8xf32, #tpu.memory_space<vmem>>, %arg9: memref<16x8xf32, #tpu.memory_space<vmem>>) attributes {dimension_semantics = [#tpu.dimension_semantics<parallel>, #tpu.dimension_semantics<arbitrary>], iteration_bounds = array<i64: 2, 1>, scalar_prefetch = 0 : i64, scratch_operands = 0 : i64, tpu.core_type = #tpu.core_type<tc>, window_params = [{transform_indices = @transform_0, window_bounds = array<i64: 16, 8>}, {transform_indices = @transform_1, window_bounds = array<i64: 1, 8, 128>}, {transform_indices = @transform_2, window_bounds = array<i64: 1, 1, 128>}, {transform_indices = @transform_3, window_bounds = array<i64: 1, 128, 64>}, {transform_indices = @transform_4, window_bounds = array<i64: 1, 1, 64>}, {transform_indices = @transform_5, window_bounds = array<i64: 1, 64, 8>}, {transform_indices = @transform_6, window_bounds = array<i64: 1, 1, 8>}, {transform_indices = @transform_7, window_bounds = array<i64: 16, 8>}]} {
    %c0 = arith.constant 0 : index
    %c0_0 = arith.constant 0 : index
    %0 = vector.load %arg2[%c0, %c0_0] : memref<16x8xf32, #tpu.memory_space<vmem>>, vector<16x8xf32>
    %c0_1 = arith.constant 0 : index
    %c0_2 = arith.constant 0 : index
    %c0_3 = arith.constant 0 : index
    %1 = vector.load %arg3[%c0_1, %c0_2, %c0_3] : memref<1x8x128xf32, #tpu.memory_space<vmem>>, vector<1x8x128xf32>
    %2 = vector.shape_cast %1 : vector<1x8x128xf32> to vector<8x128xf32>
    %cst = arith.constant dense<0.000000e+00> : vector<16x128xf32>
    %3 = tpu.matmul %0, %2, %cst {dimension_numbers = #tpu.dot_dimension_numbers<[1], [0], [0], [1], [0, 0, 1, 1], [], []>} : vector<16x8xf32>, vector<8x128xf32>, vector<16x128xf32> -> vector<16x128xf32>
    %c0_4 = arith.constant 0 : index
    %c0_5 = arith.constant 0 : index
    %c0_6 = arith.constant 0 : index
    %4 = vector.load %arg4[%c0_4, %c0_5, %c0_6] : memref<1x1x128xf32, #tpu.memory_space<vmem>>, vector<1x1x128xf32>
    %5 = vector.shape_cast %4 : vector<1x1x128xf32> to vector<1x128xf32>
    %6 = vector.broadcast %5 : vector<1x128xf32> to vector<16x128xf32>
    %7 = arith.addf %3, %6 : vector<16x128xf32>
    %c0_7 = arith.constant 0 : index
    %c0_8 = arith.constant 0 : index
    %c0_9 = arith.constant 0 : index
    %8 = vector.load %arg5[%c0_7, %c0_8, %c0_9] : memref<1x128x64xf32, #tpu.memory_space<vmem>>, vector<1x128x64xf32>
    %9 = vector.shape_cast %8 : vector<1x128x64xf32> to vector<128x64xf32>
    %c0_10 = arith.constant 0 : index
    %c0_11 = arith.constant 0 : index
    %c0_12 = arith.constant 0 : index
    %10 = vector.load %arg6[%c0_10, %c0_11, %c0_12] : memref<1x1x64xf32, #tpu.memory_space<vmem>>, vector<1x1x64xf32>
    %11 = vector.shape_cast %10 : vector<1x1x64xf32> to vector<1x64xf32>
    %cst_13 = arith.constant 5.000000e-01 : f32
    %12 = vector.broadcast %cst_13 : f32 to vector<16x128xf32>
    %13 = arith.mulf %12, %7 : vector<16x128xf32>
    %14 = math.tanh %13 : vector<16x128xf32>
    %cst_14 = arith.constant 1.000000e+00 : f32
    %15 = vector.broadcast %cst_14 : f32 to vector<16x128xf32>
    %16 = arith.addf %14, %15 : vector<16x128xf32>
    %cst_15 = arith.constant 5.000000e-01 : f32
    %17 = vector.broadcast %cst_15 : f32 to vector<16x128xf32>
    %18 = arith.mulf %17, %16 : vector<16x128xf32>
    %cst_16 = arith.constant dense<0.000000e+00> : vector<16x64xf32>
    %19 = tpu.matmul %18, %9, %cst_16 {dimension_numbers = #tpu.dot_dimension_numbers<[1], [0], [0], [1], [0, 0, 1, 1], [], []>} : vector<16x128xf32>, vector<128x64xf32>, vector<16x64xf32> -> vector<16x64xf32>
    %20 = vector.broadcast %11 : vector<1x64xf32> to vector<16x64xf32>
    %21 = arith.addf %19, %20 : vector<16x64xf32>
    %c0_17 = arith.constant 0 : index
    %c0_18 = arith.constant 0 : index
    %c0_19 = arith.constant 0 : index
    %22 = vector.load %arg7[%c0_17, %c0_18, %c0_19] : memref<1x64x8xf32, #tpu.memory_space<vmem>>, vector<1x64x8xf32>
    %23 = vector.shape_cast %22 : vector<1x64x8xf32> to vector<64x8xf32>
    %c0_20 = arith.constant 0 : index
    %c0_21 = arith.constant 0 : index
    %c0_22 = arith.constant 0 : index
    %24 = vector.load %arg8[%c0_20, %c0_21, %c0_22] : memref<1x1x8xf32, #tpu.memory_space<vmem>>, vector<1x1x8xf32>
    %25 = vector.shape_cast %24 : vector<1x1x8xf32> to vector<1x8xf32>
    %cst_23 = arith.constant 5.000000e-01 : f32
    %26 = vector.broadcast %cst_23 : f32 to vector<16x64xf32>
    %27 = arith.mulf %26, %21 : vector<16x64xf32>
    %28 = math.tanh %27 : vector<16x64xf32>
    %cst_24 = arith.constant 1.000000e+00 : f32
    %29 = vector.broadcast %cst_24 : f32 to vector<16x64xf32>
    %30 = arith.addf %28, %29 : vector<16x64xf32>
    %cst_25 = arith.constant 5.000000e-01 : f32
    %31 = vector.broadcast %cst_25 : f32 to vector<16x64xf32>
    %32 = arith.mulf %31, %30 : vector<16x64xf32>
    %cst_26 = arith.constant dense<0.000000e+00> : vector<16x8xf32>
    %33 = tpu.matmul %32, %23, %cst_26 {dimension_numbers = #tpu.dot_dimension_numbers<[1], [0], [0], [1], [0, 0, 1, 1], [], []>} : vector<16x64xf32>, vector<64x8xf32>, vector<16x8xf32> -> vector<16x8xf32>
    %34 = vector.broadcast %25 : vector<1x8xf32> to vector<16x8xf32>
    %35 = arith.addf %33, %34 : vector<16x8xf32>
    %c0_i32 = arith.constant 0 : i32
    %36 = arith.cmpi eq, %arg1, %c0_i32 : i32
    %37 = arith.extui %36 : i1 to i32
    %c0_i32_27 = arith.constant 0 : i32
    %38 = arith.cmpi ne, %37, %c0_i32_27 : i32
    scf.if %38 {
      %c0_30 = arith.constant 0 : index
      %c0_31 = arith.constant 0 : index
      %42 = vector.load %arg9[%c0_30, %c0_31] : memref<16x8xf32, #tpu.memory_space<vmem>>, vector<16x8xf32>
      tpu.vector_store %arg9[%c0_30, %c0_31], %35 {strides = array<i32>} : memref<16x8xf32, #tpu.memory_space<vmem>>, vector<16x8xf32>,
    } else {
    }
    %c0_i32_28 = arith.constant 0 : i32
    %39 = arith.cmpi sgt, %arg1, %c0_i32_28 : i32
    %40 = arith.extui %39 : i1 to i32
    %c0_i32_29 = arith.constant 0 : i32
    %41 = arith.cmpi ne, %40, %c0_i32_29 : i32
    scf.if %41 {
      %c0_30 = arith.constant 0 : index
      %c0_31 = arith.constant 0 : index
      %42 = vector.load %arg9[%c0_30, %c0_31] : memref<16x8xf32, #tpu.memory_space<vmem>>, vector<16x8xf32>
      %43 = arith.addf %42, %35 : vector<16x8xf32>
      %c0_32 = arith.constant 0 : index
      %c0_33 = arith.constant 0 : index
      %44 = vector.load %arg9[%c0_32, %c0_33] : memref<16x8xf32, #tpu.memory_space<vmem>>, vector<16x8xf32>
      tpu.vector_store %arg9[%c0_32, %c0_33], %43 {strides = array<i32>} : memref<16x8xf32, #tpu.memory_space<vmem>>, vector<16x8xf32>,
    } else {
    }
    return
  }
  func.func @transform_0(%arg0: i32, %arg1: i32) -> (i32, i32) {
    %c0_i32 = arith.constant 0 : i32
    %c0_i32_0 = arith.constant 0 : i32
    return %arg0, %c0_i32 : i32, i32
  }
  func.func @transform_1(%arg0: i32, %arg1: i32) -> (i32, i32, i32) {
    %c0_i32 = arith.constant 0 : i32
    %c0_i32_0 = arith.constant 0 : i32
    %c0_i32_1 = arith.constant 0 : i32
    return %arg1, %c0_i32, %c0_i32_0 : i32, i32, i32
  }
  func.func @transform_2(%arg0: i32, %arg1: i32) -> (i32, i32, i32) {
    %c0_i32 = arith.constant 0 : i32
    %c0_i32_0 = arith.constant 0 : i32
    %c0_i32_1 = arith.constant 0 : i32
    return %arg1, %c0_i32, %c0_i32_0 : i32, i32, i32
  }
  func.func @transform_3(%arg0: i32, %arg1: i32) -> (i32, i32, i32) {
    %c0_i32 = arith.constant 0 : i32
    %c0_i32_0 = arith.constant 0 : i32
    %c0_i32_1 = arith.constant 0 : i32
    return %arg1, %c0_i32, %c0_i32_0 : i32, i32, i32
  }
  func.func @transform_4(%arg0: i32, %arg1: i32) -> (i32, i32, i32) {
    %c0_i32 = arith.constant 0 : i32
    %c0_i32_0 = arith.constant 0 : i32
    %c0_i32_1 = arith.constant 0 : i32
    return %arg1, %c0_i32, %c0_i32_0 : i32, i32, i32
  }
  func.func @transform_5(%arg0: i32, %arg1: i32) -> (i32, i32, i32) {
    %c0_i32 = arith.constant 0 : i32
    %c0_i32_0 = arith.constant 0 : i32
    %c0_i32_1 = arith.constant 0 : i32
    return %arg1, %c0_i32, %c0_i32_0 : i32, i32, i32
  }
  func.func @transform_6(%arg0: i32, %arg1: i32) -> (i32, i32, i32) {
    %c0_i32 = arith.constant 0 : i32
    %c0_i32_0 = arith.constant 0 : i32
    %c0_i32_1 = arith.constant 0 : i32
    return %arg1, %c0_i32, %c0_i32_0 : i32, i32, i32
  }
  func.func @transform_7(%arg0: i32, %arg1: i32) -> (i32, i32) {
    %c0_i32 = arith.constant 0 : i32
    %c0_i32_0 = arith.constant 0 : i32
    return %arg0, %c0_i32 : i32, i32
  }
}

</mosaic_0001>

<llo_original>
// kernel: tpu_custom_call.1
$region0: #{tpu_custom_call.1}
  #allocation0 [shape = 'u32[]', space=smem, size = 0x4, offset = 0x4, fixed_abs, tag = 'smem constant byte address 0x4 - core index']
  #allocation1 [shape = 'u32[144,128]{1,0:T(1,128)}', space=vmem, size = 0x12000, scoped, tag = 'internal scratch']
  %s0 = inlined_call_operand.vmem [shape: f32[32,8], index: 0, kind: input, shape index: {}]
  %s1 = inlined_call_operand.vmem [shape: f32[1,8,128], index: 1, kind: input, shape index: {}]
  %s2 = inlined_call_operand.vmem [shape: f32[1,1,128], index: 2, kind: input, shape index: {}]
  %s3 = inlined_call_operand.vmem [shape: f32[1,128,64], index: 3, kind: input, shape index: {}]
  %s4 = inlined_call_operand.vmem [shape: f32[1,1,64], index: 4, kind: input, shape index: {}]
  %s5 = inlined_call_operand.vmem [shape: f32[1,64,8], index: 5, kind: input, shape index: {}]
  %s6 = inlined_call_operand.vmem [shape: f32[1,1,8], index: 6, kind: input, shape index: {}]
  %s7 = inlined_call_operand.vmem [shape: f32[32,8], index: 7, kind: output, shape index: {}]
  %s8 = sld [smem:[#allocation0]]
  $region69: #{tpu_custom_call.1} parent=0
    _
  %s10 = ssub.s32 1, %s8
  %s11 = scalar_select 0, %s10, %s8
  loop: start=0, step=1, limit=4
  $region2: #{tpu_custom_call.1} parent=0 // loop_pre_header
    _
  $region3: #{tpu_custom_call.1} parent=0 // loop_header
    %s13 = sphi 0, %s17
    %p14 = scmp.ge.s32.totalorder %s13, 4
    %s20 = sphi 0, %s32
    %s21 = sphi 0, %s28
    %s22 = sphi 0, %s20
    %s23 = sphi 0, %s21
    %s24 = sphi 0, %s22
    %s25 = sphi 0, %s23
    %s35 = sphi 0, %s37
    %s38 = sphi 0, %s35
    %s39 = sphi 0, %s38
    %s55 = sphi 0, %s39
    %s61 = sphi 0, %s63
    %s64 = sphi 0, %s61
    %s65 = sphi 0, %s64
    %s81 = sphi 0, %s65
    %s87 = sphi 0, %s89
    %s90 = sphi 0, %s87
    %s91 = sphi 0, %s90
    %s107 = sphi 0, %s91
    %s113 = sphi 0, %s115
    %s116 = sphi 0, %s113
    %s117 = sphi 0, %s116
    %s133 = sphi 0, %s117
    %s139 = sphi 0, %s141
    %s142 = sphi 0, %s139
    %s143 = sphi 0, %s142
    %s159 = sphi 0, %s143
    %s165 = sphi 0, %s167
    %s168 = sphi 0, %s165
    %s169 = sphi 0, %s168
    %s185 = sphi 0, %s169
    %s191 = sphi 0, %s193
    %s194 = sphi 0, %s191
    %s195 = sphi 0, %s194
    %s211 = sphi 0, %s195
    %s217 = sphi 0, %s219
    %s220 = sphi 0, %s217
    %s221 = sphi 0, %s220
    %s237 = sphi 0, %s221
  $region4: #{tpu_custom_call.1} parent=0 // loop_header_branch
    %16 = sbr.rel (%p14) target = $region8
  $region5: #{tpu_custom_call.1} parent=0 // loop_body
    %s18 = ssub.s32 %s13, 1
    %s19 = ssub.s32 %s13, 2
    %s26 = sadd.s32 1, %s21
    %p27 = scmp.ge.s32.totalorder %s26, 1
    %s28 = scalar_select %p27, 0, %s26
    %s29 = sadd.s32 1, %s20
    %s30 = scalar_select %p27, %s29, %s20
    %p31 = scmp.ge.s32.totalorder %s30, 2
    %s32 = scalar_select %p31, 0, %s30
    %s33 = ssub.s32 %s20, %s32
    %p34 = scmp.eq.s32.totalorder %s33, 0
    %s36 = sadd.s32 %s35, 1
    %s37 = scalar_select %p34, %s35, %s36
    %p40 = pneg %p34
    %p41 = scmp.eq.s32.totalorder %s13, 1
    %p42 = por %p40, %p41
    %p43 = scmp.ne.s32.totalorder %s35, %s38
    %p44 = scmp.eq.s32.totalorder %s13, 0
    %p45 = por %p43, %p44
    %p46 = scmp.ne.s32.totalorder %s35, %s38
    %p47 = scmp.eq.s32.totalorder %s18, 1
    %p48 = por %p46, %p47
    %p49 = scmp.ne.s32.totalorder %s38, %s39
    %p50 = scmp.eq.s32.totalorder %s18, 0
    %p51 = por %p49, %p50
    %p52 = scmp.ne.s32.totalorder %s38, %s39
    %p53 = scmp.eq.s32.totalorder %s19, 1
    %p54 = por %p52, %p53
    %p56 = scmp.ne.s32.totalorder %s39, %s55
    %p57 = scmp.eq.s32.totalorder %s19, 0
    %p58 = por %p56, %p57
    %s59 = ssub.s32 %s21, %s28
    %p60 = scmp.eq.s32.totalorder %s59, 0
    %s62 = sadd.s32 %s61, 1
    %s63 = scalar_select %p60, %s61, %s62
    %p66 = pneg %p60
    %p67 = scmp.eq.s32.totalorder %s13, 1
    %p68 = por %p66, %p67
    %p69 = scmp.ne.s32.totalorder %s61, %s64
    %p70 = scmp.eq.s32.totalorder %s13, 0
    %p71 = por %p69, %p70
    %p72 = scmp.ne.s32.totalorder %s61, %s64
    %p73 = scmp.eq.s32.totalorder %s18, 1
    %p74 = por %p72, %p73
    %p75 = scmp.ne.s32.totalorder %s64, %s65
    %p76 = scmp.eq.s32.totalorder %s18, 0
    %p77 = por %p75, %p76
    %p78 = scmp.ne.s32.totalorder %s64, %s65
    %p79 = scmp.eq.s32.totalorder %s19, 1
    %p80 = por %p78, %p79
    %p82 = scmp.ne.s32.totalorder %s65, %s81
    %p83 = scmp.eq.s32.totalorder %s19, 0
    %p84 = por %p82, %p83
    %s85 = ssub.s32 %s21, %s28
    %p86 = scmp.eq.s32.totalorder %s85, 0
    %s88 = sadd.s32 %s87, 1
    %s89 = scalar_select %p86, %s87, %s88
    %p92 = pneg %p86
    %p93 = scmp.eq.s32.totalorder %s13, 1
    %p94 = por %p92, %p93
    %p95 = scmp.ne.s32.totalorder %s87, %s90
    %p96 = scmp.eq.s32.totalorder %s13, 0
    %p97 = por %p95, %p96
    %p98 = scmp.ne.s32.totalorder %s87, %s90
    %p99 = scmp.eq.s32.totalorder %s18, 1
    %p100 = por %p98, %p99
    %p101 = scmp.ne.s32.totalorder %s90, %s91
    %p102 = scmp.eq.s32.totalorder %s18, 0
    %p103 = por %p101, %p102
    %p104 = scmp.ne.s32.totalorder %s90, %s91
    %p105 = scmp.eq.s32.totalorder %s19, 1
    %p106 = por %p104, %p105
    %p108 = scmp.ne.s32.totalorder %s91, %s107
    %p109 = scmp.eq.s32.totalorder %s19, 0
    %p110 = por %p108, %p109
    %s111 = ssub.s32 %s21, %s28
    %p112 = scmp.eq.s32.totalorder %s111, 0
    %s114 = sadd.s32 %s113, 1
    %s115 = scalar_select %p112, %s113, %s114
    %p118 = pneg %p112
    %p119 = scmp.eq.s32.totalorder %s13, 1
    %p120 = por %p118, %p119
    %p121 = scmp.ne.s32.totalorder %s113, %s116
    %p122 = scmp.eq.s32.totalorder %s13, 0
    %p123 = por %p121, %p122
    %p124 = scmp.ne.s32.totalorder %s113, %s116
    %p125 = scmp.eq.s32.totalorder %s18, 1
    %p126 = por %p124, %p125
    %p127 = scmp.ne.s32.totalorder %s116, %s117
    %p128 = scmp.eq.s32.totalorder %s18, 0
    %p129 = por %p127, %p128
    %p130 = scmp.ne.s32.totalorder %s116, %s117
    %p131 = scmp.eq.s32.totalorder %s19, 1
    %p132 = por %p130, %p131
    %p134 = scmp.ne.s32.totalorder %s117, %s133
    %p135 = scmp.eq.s32.totalorder %s19, 0
    %p136 = por %p134, %p135
    %s137 = ssub.s32 %s21, %s28
    %p138 = scmp.eq.s32.totalorder %s137, 0
    %s140 = sadd.s32 %s139, 1
    %s141 = scalar_select %p138, %s139, %s140
    %p144 = pneg %p138
    %p145 = scmp.eq.s32.totalorder %s13, 1
    %p146 = por %p144, %p145
    %p147 = scmp.ne.s32.totalorder %s139, %s142
    %p148 = scmp.eq.s32.totalorder %s13, 0
    %p149 = por %p147, %p148
    %p150 = scmp.ne.s32.totalorder %s139, %s142
    %p151 = scmp.eq.s32.totalorder %s18, 1
    %p152 = por %p150, %p151
    %p153 = scmp.ne.s32.totalorder %s142, %s143
    %p154 = scmp.eq.s32.totalorder %s18, 0
    %p155 = por %p153, %p154
    %p156 = scmp.ne.s32.totalorder %s142, %s143
    %p157 = scmp.eq.s32.totalorder %s19, 1
    %p158 = por %p156, %p157
    %p160 = scmp.ne.s32.totalorder %s143, %s159
    %p161 = scmp.eq.s32.totalorder %s19, 0
    %p162 = por %p160, %p161
    %s163 = ssub.s32 %s21, %s28
    %p164 = scmp.eq.s32.totalorder %s163, 0
    %s166 = sadd.s32 %s165, 1
    %s167 = scalar_select %p164, %s165, %s166
    %p170 = pneg %p164
    %p171 = scmp.eq.s32.totalorder %s13, 1
    %p172 = por %p170, %p171
    %p173 = scmp.ne.s32.totalorder %s165, %s168
    %p174 = scmp.eq.s32.totalorder %s13, 0
    %p175 = por %p173, %p174
    %p176 = scmp.ne.s32.totalorder %s165, %s168
    %p177 = scmp.eq.s32.totalorder %s18, 1
    %p178 = por %p176, %p177
    %p179 = scmp.ne.s32.totalorder %s168, %s169
    %p180 = scmp.eq.s32.totalorder %s18, 0
    %p181 = por %p179, %p180
    %p182 = scmp.ne.s32.totalorder %s168, %s169
    %p183 = scmp.eq.s32.totalorder %s19, 1
    %p184 = por %p182, %p183
    %p186 = scmp.ne.s32.totalorder %s169, %s185
    %p187 = scmp.eq.s32.totalorder %s19, 0
    %p188 = por %p186, %p187
    %s189 = ssub.s32 %s21, %s28
    %p190 = scmp.eq.s32.totalorder %s189, 0
    %s192 = sadd.s32 %s191, 1
    %s193 = scalar_select %p190, %s191, %s192
    %p196 = pneg %p190
    %p197 = scmp.eq.s32.totalorder %s13, 1
    %p198 = por %p196, %p197
    %p199 = scmp.ne.s32.totalorder %s191, %s194
    %p200 = scmp.eq.s32.totalorder %s13, 0
    %p201 = por %p199, %p200
    %p202 = scmp.ne.s32.totalorder %s191, %s194
    %p203 = scmp.eq.s32.totalorder %s18, 1
    %p204 = por %p202, %p203
    %p205 = scmp.ne.s32.totalorder %s194, %s195
    %p206 = scmp.eq.s32.totalorder %s18, 0
    %p207 = por %p205, %p206
    %p208 = scmp.ne.s32.totalorder %s194, %s195
    %p209 = scmp.eq.s32.totalorder %s19, 1
    %p210 = por %p208, %p209
    %p212 = scmp.ne.s32.totalorder %s195, %s211
    %p213 = scmp.eq.s32.totalorder %s19, 0
    %p214 = por %p212, %p213
    %s215 = ssub.s32 %s20, %s32
    %p216 = scmp.eq.s32.totalorder %s215, 0
    %s218 = sadd.s32 %s217, 1
    %s219 = scalar_select %p216, %s217, %s218
    %p222 = pneg %p216
    %p223 = scmp.eq.s32.totalorder %s13, 1
    %p224 = por %p222, %p223
    %p225 = scmp.ne.s32.totalorder %s217, %s220
    %p226 = scmp.eq.s32.totalorder %s13, 0
    %p227 = por %p225, %p226
    %p228 = scmp.ne.s32.totalorder %s217, %s220
    %p229 = scmp.eq.s32.totalorder %s18, 1
    %p230 = por %p228, %p229
    %p231 = scmp.ne.s32.totalorder %s220, %s221
    %p232 = scmp.eq.s32.totalorder %s18, 0
    %p233 = por %p231, %p232
    %p234 = scmp.ne.s32.totalorder %s220, %s221
    %p235 = scmp.eq.s32.totalorder %s19, 1
    %p236 = por %p234, %p235
    %p238 = scmp.ne.s32.totalorder %s221, %s237
    %p239 = scmp.eq.s32.totalorder %s19, 0
    %p240 = por %p238, %p239
    %p241 = scmp.le.s32.totalorder 1, %s13
    %p242 = scmp.lt.s32.totalorder %s13, 3
    %p243 = pnand %p241, %p242
    %p244 = pneg %p243
    // Predicated region
    $region9: #{tpu_custom_call.1} parent=5 // pred_check
      _
    $region10: #{tpu_custom_call.1} parent=5 // pred_check_branch
      %246 = sbr.rel (%p243) target = $region12
    $region11: #{tpu_custom_call.1} parent=5 // pred_region
      %s247 = ssub.s32 %s13, 1
      // Predicated region
      $region13: #{tpu_custom_call.1} parent=11 // pred_check
        %p248 = pneg %p77
      $region14: #{tpu_custom_call.1} parent=11 // pred_check_branch
        %250 = sbr.rel (%p248) target = $region16
      $region15: #{tpu_custom_call.1} parent=11 // pred_region
        %p251 = scmp.lt.s32.totalorder %s23, 0
        %s252 = scalar_select %p251, %s23, 0
        %s253 = smul.addr %s252, 8
        %s254 = scalar_lea.vmem %s1, %s253
      $region16: #{tpu_custom_call.1} parent=11 // pred_fallthru
        _
      // Predicated region
      $region17: #{tpu_custom_call.1} parent=11 // pred_check
        %p255 = pneg %p103
      $region18: #{tpu_custom_call.1} parent=11 // pred_check_branch
        %257 = sbr.rel (%p255) target = $region20
      $region19: #{tpu_custom_call.1} parent=11 // pred_region
        %p258 = scmp.lt.s32.totalorder %s23, 0
        %s259 = scalar_select %p258, %s23, 0
        %s260 = scalar_lea.vmem %s2, %s259
      $region20: #{tpu_custom_call.1} parent=11 // pred_fallthru
        _
      // Predicated region
      $region21: #{tpu_custom_call.1} parent=11 // pred_check
        %p261 = pneg %p129
      $region22: #{tpu_custom_call.1} parent=11 // pred_check_branch
        %263 = sbr.rel (%p261) target = $region24
      $region23: #{tpu_custom_call.1} parent=11 // pred_region
        %p264 = scmp.lt.s32.totalorder %s23, 0
        %s265 = scalar_select %p264, %s23, 0
        %s266 = smul.addr %s265, 16
        %s267 = smul.addr %s266, 8
        %s268 = scalar_lea.vmem %s3, %s267
      $region24: #{tpu_custom_call.1} parent=11 // pred_fallthru
        _
      // Predicated region
      $region25: #{tpu_custom_call.1} parent=11 // pred_check
        %p269 = pneg %p155
      $region26: #{tpu_custom_call.1} parent=11 // pred_check_branch
        %271 = sbr.rel (%p269) target = $region28
      $region27: #{tpu_custom_call.1} parent=11 // pred_region
        %p272 = scmp.lt.s32.totalorder %s23, 0
        %s273 = scalar_select %p272, %s23, 0
        %s274 = scalar_lea.vmem %s4, %s273
      $region28: #{tpu_custom_call.1} parent=11 // pred_fallthru
        _
      // Predicated region
      $region29: #{tpu_custom_call.1} parent=11 // pred_check
        %p275 = pneg %p181
      $region30: #{tpu_custom_call.1} parent=11 // pred_check_branch
        %277 = sbr.rel (%p275) target = $region32
      $region31: #{tpu_custom_call.1} parent=11 // pred_region
        %p278 = scmp.lt.s32.totalorder %s23, 0
        %s279 = scalar_select %p278, %s23, 0
        %s280 = smul.addr %s279, 8
        %s281 = smul.addr %s280, 8
        %s282 = scalar_lea.vmem %s5, %s281
      $region32: #{tpu_custom_call.1} parent=11 // pred_fallthru
        _
      // Predicated region
      $region33: #{tpu_custom_call.1} parent=11 // pred_check
        %p283 = pneg %p207
      $region34: #{tpu_custom_call.1} parent=11 // pred_check_branch
        %285 = sbr.rel (%p283) target = $region36
      $region35: #{tpu_custom_call.1} parent=11 // pred_region
        %p286 = scmp.lt.s32.totalorder %s23, 0
        %s287 = scalar_select %p286, %s23, 0
        %s288 = scalar_lea.vmem %s6, %s287
      $region36: #{tpu_custom_call.1} parent=11 // pred_fallthru
        _
    $region12: #{tpu_custom_call.1} parent=5 // pred_fallthru
      _
    %p289 = scmp.lt.s32.totalorder %s13, 2
    // Predicated region
    $region37: #{tpu_custom_call.1} parent=5 // pred_check
      %p290 = pneg %p289
    $region38: #{tpu_custom_call.1} parent=5 // pred_check_branch
      %292 = sbr.rel (%p290) target = $region40
    $region39: #{tpu_custom_call.1} parent=5 // pred_region
      // Predicated region
      $region41: #{tpu_custom_call.1} parent=39 // pred_check
        %p293 = pneg %p45
      $region42: #{tpu_custom_call.1} parent=39 // pred_check_branch
        %295 = sbr.rel (%p293) target = $region44
      $region43: #{tpu_custom_call.1} parent=39 // pred_region
        %s296 = smul.u32 2, %s20
        %p297 = scmp.lt.s32.totalorder %s296, 3
        %s298 = scalar_select %p297, %s296, 3
        %s299 = smul.addr %s298, 8
        %s300 = scalar_lea.vmem %s0, %s299
        %s301 = smul.u32 2, %s20
      $region44: #{tpu_custom_call.1} parent=39 // pred_fallthru
        _
    $region40: #{tpu_custom_call.1} parent=5 // pred_fallthru
      _
    %p302 = scmp.le.s32.totalorder 1, %s13
    %p303 = scmp.lt.s32.totalorder %s13, 3
    %p304 = pnand %p302, %p303
    %p305 = pneg %p304
    // Predicated region
    $region45: #{tpu_custom_call.1} parent=5 // pred_check
      _
    $region46: #{tpu_custom_call.1} parent=5 // pred_check_branch
      %307 = sbr.rel (%p304) target = $region48
    $region47: #{tpu_custom_call.1} parent=5 // pred_region
      %s308 = ssub.s32 %s13, 1
      %s309 = smul.u32 2, %s22
      %p310 = scmp.lt.s32.totalorder %s309, 3
      %s311 = scalar_select %p310, %s309, 3
      %s312 = smul.addr %s311, 8
      %s313 = scalar_lea.vmem %s0, %s312
      %p314 = pneg %p51
      %p315 = pneg %p48
      %p316 = scmp.lt.s32.totalorder %s23, 0
      %s317 = scalar_select %p316, %s23, 0
      %s318 = smul.addr %s317, 8
      %s319 = scalar_lea.vmem %s1, %s318
      %p320 = pneg %p77
      %p321 = pneg %p74
      %p322 = scmp.lt.s32.totalorder %s23, 0
      %s323 = scalar_select %p322, %s23, 0
      %s324 = scalar_lea.vmem %s2, %s323
      %p325 = pneg %p103
      %p326 = pneg %p100
      %p327 = scmp.lt.s32.totalorder %s23, 0
      %s328 = scalar_select %p327, %s23, 0
      %s329 = smul.addr %s328, 16
      %s330 = smul.addr %s329, 8
      %s331 = scalar_lea.vmem %s3, %s330
      %p332 = pneg %p129
      %p333 = pneg %p126
      %p334 = scmp.lt.s32.totalorder %s23, 0
      %s335 = scalar_select %p334, %s23, 0
      %s336 = scalar_lea.vmem %s4, %s335
      %p337 = pneg %p155
      %p338 = pneg %p152
      %p339 = scmp.lt.s32.totalorder %s23, 0
      %s340 = scalar_select %p339, %s23, 0
      %s341 = smul.addr %s340, 8
      %s342 = smul.addr %s341, 8
      %s343 = scalar_lea.vmem %s5, %s342
      %p344 = pneg %p181
      %p345 = pneg %p178
      %p346 = scmp.lt.s32.totalorder %s23, 0
      %s347 = scalar_select %p346, %s23, 0
      %s348 = scalar_lea.vmem %s6, %s347
      %p349 = pneg %p207
      %p350 = pneg %p204
      %p351 = pneg %p233
      %p352 = pneg %p230
      %s353 = smul.u32 2, %s22
      %p354 = scmp.lt.s32.totalorder %s353, 3
      %s355 = scalar_select %p354, %s353, 3
      %s356 = smul.addr %s355, 8
      %s357 = scalar_lea.vmem %s7, %s356
      %s358 = smul.u32 2, %s22
      %p359 = scmp.lt.s32.totalorder %s358, 3
      %s360 = scalar_select %p359, %s358, 3
      %s361 = smul.addr %s360, 8
      %s362 = scalar_lea.vmem %s0, %s361
      %s363 = smul.u32 2, %s22
      %p364 = scmp.lt.s32.totalorder %s23, 0
      %s365 = scalar_select %p364, %s23, 0
      %s366 = smul.addr %s365, 8
      %s367 = scalar_lea.vmem %s1, %s366
      %p368 = scmp.lt.s32.totalorder %s23, 0
      %s369 = scalar_select %p368, %s23, 0
      %s370 = scalar_lea.vmem %s2, %s369
      %p371 = scmp.lt.s32.totalorder %s23, 0
      %s372 = scalar_select %p371, %s23, 0
      %s373 = smul.addr %s372, 16
      %s374 = smul.addr %s373, 8
      %s375 = scalar_lea.vmem %s3, %s374
      %p376 = scmp.lt.s32.totalorder %s23, 0
      %s377 = scalar_select %p376, %s23, 0
      %s378 = scalar_lea.vmem %s4, %s377
      %p379 = scmp.lt.s32.totalorder %s23, 0
      %s380 = scalar_select %p379, %s23, 0
      %s381 = smul.addr %s380, 8
      %s382 = smul.addr %s381, 8
      %s383 = scalar_lea.vmem %s5, %s382
      %p384 = scmp.lt.s32.totalorder %s23, 0
      %s385 = scalar_select %p384, %s23, 0
      %s386 = scalar_lea.vmem %s6, %s385
      %s387 = smul.u32 2, %s22
      %p388 = scmp.lt.s32.totalorder %s387, 3
      %s389 = scalar_select %p388, %s387, 3
      %s390 = smul.addr %s389, 8
      %s391 = scalar_lea.vmem %s7, %s390
      %s392 = smul.u32 2, %s22
      %v393 = vld [vmem:[%s362] sm:$0xff]
      %v394 = vld [vmem:[%s362 + $0x8] sm:$0xff]
      %v395 = vld [vmem:[%s367] sm:$0xff]
      %v396 = vld [vmem:[%s370] sm:$0x1]
      %v398 = vlaneseq
      %v399 = vshrl.u32 %v398, 7
      %v400 = vsub.s32 0, %v399
      %v401 = vrot.slane %v396, %v400
      %vm403 = vcmask 64512
      %v405 = vsel %vm403, %v393, 0
      %v408 = vsel %vm403, %v394, 0
      %410 = vmatprep.subr.mxu0 0.0
      %411 = vmatpush1.msra.mxu0 0.0
      %412 = vmatprep.subr.mxu0 0.0
      %413 = vmatpush1.msra.mxu0 0.0
      %414 = vmatprep.subr.mxu0 0.0
      %415 = vmatpush1.msra.mxu0 0.0
      %416 = vmatprep.subr.mxu0 0.0
      %417 = vmatpush1.msra.mxu0 0.0
      %418 = vmatprep.subr.mxu0 0.0
      %419 = vmatpush1.msra.mxu0 0.0
      %420 = vmatprep.subr.mxu0 0.0
      %421 = vmatpush1.msra.mxu0 0.0
      %422 = vmatprep.subr.mxu0 0.0
      %423 = vmatpush1.msra.mxu0 0.0
      %424 = vmatprep.subr.mxu0 0.0
      %425 = vmatpush1.msra.mxu0 0.0
      %426 = vmatprep.subr.mxu0 0.0
      %427 = vmatpush1.msra.mxu0 0.0
      %428 = vmatprep.subr.mxu0 0.0
      %429 = vmatpush1.msra.mxu0 0.0
      %430 = vmatprep.subr.mxu0 0.0
      %431 = vmatpush1.msra.mxu0 0.0
      %432 = vmatprep.subr.mxu0 0.0
      %433 = vmatpush1.msra.mxu0 0.0
      %434 = vmatprep.subr.mxu0 0.0
      %435 = vmatpush1.msra.mxu0 0.0
      %436 = vmatprep.subr.mxu0 0.0
      %437 = vmatpush1.msra.mxu0 0.0
      %438 = vmatprep.subr.mxu0 0.0
      %439 = vmatpush1.msra.mxu0 0.0
      %440 = vmatprep.subr.mxu0 0.0
      %441 = vmatpush1.msra.mxu0 %v395
      %442 = vmatprep.subr.mxu0 0.0
      %443 = vmatpush2.msra.mxu0 0.0
      %444 = vmatprep.subr.mxu0 0.0
      %445 = vmatpush2.msra.mxu0 0.0
      %446 = vmatprep.subr.mxu0 0.0
      %447 = vmatpush2.msra.mxu0 0.0
      %448 = vmatprep.subr.mxu0 0.0
      %449 = vmatpush2.msra.mxu0 0.0
      %450 = vmatprep.subr.mxu0 0.0
      %451 = vmatpush2.msra.mxu0 0.0
      %452 = vmatprep.subr.mxu0 0.0
      %453 = vmatpush2.msra.mxu0 0.0
      %454 = vmatprep.subr.mxu0 0.0
      %455 = vmatpush2.msra.mxu0 0.0
      %456 = vmatprep.subr.mxu0 0.0
      %457 = vmatpush2.msra.mxu0 0.0
      %458 = vmatprep.subr.mxu0 0.0
      %459 = vmatpush2.msra.mxu0 0.0
      %460 = vmatprep.subr.mxu0 0.0
      %461 = vmatpush2.msra.mxu0 0.0
      %462 = vmatprep.subr.mxu0 0.0
      %463 = vmatpush2.msra.mxu0 0.0
      %464 = vmatprep.subr.mxu0 0.0
      %465 = vmatpush2.msra.mxu0 0.0
      %466 = vmatprep.subr.mxu0 0.0
      %467 = vmatpush2.msra.mxu0 0.0
      %468 = vmatprep.subr.mxu0 0.0
      %469 = vmatpush2.msra.mxu0 0.0
      %470 = vmatprep.subr.mxu0 0.0
      %471 = vmatpush2.msra.mxu0 0.0
      %472 = vmatprep.subr.mxu0 0.0
      %473 = vmatpush2.msra.mxu0 0.0
      %474 = vmatprep.mubr.f32.mxu0 0.0
      %475 = vmatmul.mubr.f32.gmra.mxu0 %v405
      %v476 = vpop.f32.mrf.mxu0
      %v477 = vadd.f32 %v401, %v476
      %v478 = vpop.f32.mrf.mxu0
      %479 = vmatprep.mubr.f32.mxu0 0.0
      %480 = vmatmul.mubr.f32.gmra.mxu0 %v408
      %v481 = vpop.f32.mrf.mxu0
      %v482 = vadd.f32 %v401, %v481
      %v483 = vpop.f32.mrf.mxu0
      %484 = vdwg.mxu0
      %v485 = vld [vmem:[%s375] sm:$0xff]
      %v486 = vld [vmem:[%s375 + $0x8] sm:$0xff]
      %v487 = vld [vmem:[%s375 + $0x10] sm:$0xff]
      %v488 = vld [vmem:[%s375 + $0x18] sm:$0xff]
      %v489 = vld [vmem:[%s375 + $0x20] sm:$0xff]
      %v490 = vld [vmem:[%s375 + $0x28] sm:$0xff]
      %v491 = vld [vmem:[%s375 + $0x30] sm:$0xff]
      %v492 = vld [vmem:[%s375 + $0x38] sm:$0xff]
      %v493 = vld [vmem:[%s375 + $0x40] sm:$0xff]
      %v494 = vld [vmem:[%s375 + $0x48] sm:$0xff]
      %v495 = vld [vmem:[%s375 + $0x50] sm:$0xff]
      %v496 = vld [vmem:[%s375 + $0x58] sm:$0xff]
      %v497 = vld [vmem:[%s375 + $0x60] sm:$0xff]
      %v498 = vld [vmem:[%s375 + $0x68] sm:$0xff]
      %v499 = vld [vmem:[%s375 + $0x70] sm:$0xff]
      %v500 = vld [vmem:[%s375 + $0x78] sm:$0xff]
      %v501 = vld [vmem:[%s378] sm:$0x1]
      %v502 = vmul.f32 %v477, 0.5
      %v503 = vmul.f32 %v482, 0.5
      %v504 = vtanh.pop %v502
      %v505 = vtanh.pop %v503
      %v506 = vadd.f32 %v504, 1.0
      %v507 = vadd.f32 %v505, 1.0
      %v508 = vmul.f32 %v506, 0.5
      %v509 = vmul.f32 %v507, 0.5
      %v511 = vlaneseq
      %v512 = vshrl.u32 %v511, 7
      %v513 = vsub.s32 0, %v512
      %v514 = vrot.slane %v501, %v513
      %516 = vmatprep.subr.mxu0 0.0
      %517 = vmatpush1.msra.mxu0 %v500
      %518 = vmatprep.subr.mxu0 0.0
      %519 = vmatpush1.msra.mxu0 %v499
      %520 = vmatprep.subr.mxu0 0.0
      %521 = vmatpush1.msra.mxu0 %v498
      %522 = vmatprep.subr.mxu0 0.0
      %523 = vmatpush1.msra.mxu0 %v497
      %524 = vmatprep.subr.mxu0 0.0
      %525 = vmatpush1.msra.mxu0 %v496
      %526 = vmatprep.subr.mxu0 0.0
      %527 = vmatpush1.msra.mxu0 %v495
      %528 = vmatprep.subr.mxu0 0.0
      %529 = vmatpush1.msra.mxu0 %v494
      %530 = vmatprep.subr.mxu0 0.0
      %531 = vmatpush1.msra.mxu0 %v493
      %532 = vmatprep.subr.mxu0 0.0
      %533 = vmatpush1.msra.mxu0 %v492
      %534 = vmatprep.subr.mxu0 0.0
      %535 = vmatpush1.msra.mxu0 %v491
      %536 = vmatprep.subr.mxu0 0.0
      %537 = vmatpush1.msra.mxu0 %v490
      %538 = vmatprep.subr.mxu0 0.0
      %539 = vmatpush1.msra.mxu0 %v489
      %540 = vmatprep.subr.mxu0 0.0
      %541 = vmatpush1.msra.mxu0 %v488
      %542 = vmatprep.subr.mxu0 0.0
      %543 = vmatpush1.msra.mxu0 %v487
      %544 = vmatprep.subr.mxu0 0.0
      %545 = vmatpush1.msra.mxu0 %v486
      %546 = vmatprep.subr.mxu0 0.0
      %547 = vmatpush1.msra.mxu0 %v485
      %548 = vmatprep.subr.mxu0 0.0
      %549 = vmatpush2.msra.mxu0 0.0
      %550 = vmatprep.subr.mxu0 0.0
      %551 = vmatpush2.msra.mxu0 0.0
      %552 = vmatprep.subr.mxu0 0.0
      %553 = vmatpush2.msra.mxu0 0.0
      %554 = vmatprep.subr.mxu0 0.0
      %555 = vmatpush2.msra.mxu0 0.0
      %556 = vmatprep.subr.mxu0 0.0
      %557 = vmatpush2.msra.mxu0 0.0
      %558 = vmatprep.subr.mxu0 0.0
      %559 = vmatpush2.msra.mxu0 0.0
      %560 = vmatprep.subr.mxu0 0.0
      %561 = vmatpush2.msra.mxu0 0.0
      %562 = vmatprep.subr.mxu0 0.0
      %563 = vmatpush2.msra.mxu0 0.0
      %564 = vmatprep.subr.mxu0 0.0
      %565 = vmatpush2.msra.mxu0 0.0
      %566 = vmatprep.subr.mxu0 0.0
      %567 = vmatpush2.msra.mxu0 0.0
      %568 = vmatprep.subr.mxu0 0.0
      %569 = vmatpush2.msra.mxu0 0.0
      %570 = vmatprep.subr.mxu0 0.0
      %571 = vmatpush2.msra.mxu0 0.0
      %572 = vmatprep.subr.mxu0 0.0
      %573 = vmatpush2.msra.mxu0 0.0
      %574 = vmatprep.subr.mxu0 0.0
      %575 = vmatpush2.msra.mxu0 0.0
      %576 = vmatprep.subr.mxu0 0.0
      %577 = vmatpush2.msra.mxu0 0.0
      %578 = vmatprep.subr.mxu0 0.0
      %579 = vmatpush2.msra.mxu0 0.0
      %580 = vmatprep.mubr.f32.mxu0 0.0
      %581 = vmatmul.mubr.f32.gmra.mxu0 %v508
      %v582 = vpop.f32.mrf.mxu0
      %v583 = vadd.f32 %v514, %v582
      %v584 = vpop.f32.mrf.mxu0
      %585 = vmatprep.mubr.f32.mxu0 0.0
      %586 = vmatmul.mubr.f32.gmra.mxu0 %v509
      %v587 = vpop.f32.mrf.mxu0
      %v588 = vadd.f32 %v514, %v587
      %v589 = vpop.f32.mrf.mxu0
      %590 = vdwg.mxu0
      %v591 = vld [vmem:[%s383] sm:$0xff]
      %v592 = vld [vmem:[%s383 + $0x8] sm:$0xff]
      %v593 = vld [vmem:[%s383 + $0x10] sm:$0xff]
      %v594 = vld [vmem:[%s383 + $0x18] sm:$0xff]
      %v595 = vld [vmem:[%s383 + $0x20] sm:$0xff]
      %v596 = vld [vmem:[%s383 + $0x28] sm:$0xff]
      %v597 = vld [vmem:[%s383 + $0x30] sm:$0xff]
      %v598 = vld [vmem:[%s383 + $0x38] sm:$0xff]
      %v599 = vld [vmem:[%s386] sm:$0x1]
      %v600 = vmul.f32 %v583, 0.5
      %v601 = vmul.f32 %v588, 0.5
      %v602 = vtanh.pop %v600
      %v603 = vtanh.pop %v601
      %v604 = vadd.f32 %v602, 1.0
      %v605 = vadd.f32 %v603, 1.0
      %v606 = vmul.f32 %v604, 0.5
      %v607 = vmul.f32 %v605, 0.5
      %v609 = vlaneseq
      %v610 = vshrl.u32 %v609, 7
      %v611 = vsub.s32 0, %v610
      %v612 = vrot.slane %v599, %v611
      %vm614 = vcmask 523264
      %v616 = vsel %vm614, %v606, 0
      %v619 = vsel %vm614, %v607, 0
      %621 = vmatprep.subr.mxu0 0.0
      %622 = vmatpush1.msra.mxu0 0.0
      %623 = vmatprep.subr.mxu0 0.0
      %624 = vmatpush1.msra.mxu0 0.0
      %625 = vmatprep.subr.mxu0 0.0
      %626 = vmatpush1.msra.mxu0 0.0
      %627 = vmatprep.subr.mxu0 0.0
      %628 = vmatpush1.msra.mxu0 0.0
      %629 = vmatprep.subr.mxu0 0.0
      %630 = vmatpush1.msra.mxu0 0.0
      %631 = vmatprep.subr.mxu0 0.0
      %632 = vmatpush1.msra.mxu0 0.0
      %633 = vmatprep.subr.mxu0 0.0
      %634 = vmatpush1.msra.mxu0 0.0
      %635 = vmatprep.subr.mxu0 0.0
      %636 = vmatpush1.msra.mxu0 0.0
      %637 = vmatprep.subr.mxu0 0.0
      %638 = vmatpush1.msra.mxu0 %v598
      %639 = vmatprep.subr.mxu0 0.0
      %640 = vmatpush1.msra.mxu0 %v597
      %641 = vmatprep.subr.mxu0 0.0
      %642 = vmatpush1.msra.mxu0 %v596
      %643 = vmatprep.subr.mxu0 0.0
      %644 = vmatpush1.msra.mxu0 %v595
      %645 = vmatprep.subr.mxu0 0.0
      %646 = vmatpush1.msra.mxu0 %v594
      %647 = vmatprep.subr.mxu0 0.0
      %648 = vmatpush1.msra.mxu0 %v593
      %649 = vmatprep.subr.mxu0 0.0
      %650 = vmatpush1.msra.mxu0 %v592
      %651 = vmatprep.subr.mxu0 0.0
      %652 = vmatpush1.msra.mxu0 %v591
      %653 = vmatprep.subr.mxu0 0.0
      %654 = vmatpush2.msra.mxu0 0.0
      %655 = vmatprep.subr.mxu0 0.0
      %656 = vmatpush2.msra.mxu0 0.0
      %657 = vmatprep.subr.mxu0 0.0
      %658 = vmatpush2.msra.mxu0 0.0
      %659 = vmatprep.subr.mxu0 0.0
      %660 = vmatpush2.msra.mxu0 0.0
      %661 = vmatprep.subr.mxu0 0.0
      %662 = vmatpush2.msra.mxu0 0.0
      %663 = vmatprep.subr.mxu0 0.0
      %664 = vmatpush2.msra.mxu0 0.0
      %665 = vmatprep.subr.mxu0 0.0
      %666 = vmatpush2.msra.mxu0 0.0
      %667 = vmatprep.subr.mxu0 0.0
      %668 = vmatpush2.msra.mxu0 0.0
      %669 = vmatprep.subr.mxu0 0.0
      %670 = vmatpush2.msra.mxu0 0.0
      %671 = vmatprep.subr.mxu0 0.0
      %672 = vmatpush2.msra.mxu0 0.0
      %673 = vmatprep.subr.mxu0 0.0
      %674 = vmatpush2.msra.mxu0 0.0
      %675 = vmatprep.subr.mxu0 0.0
      %676 = vmatpush2.msra.mxu0 0.0
      %677 = vmatprep.subr.mxu0 0.0
      %678 = vmatpush2.msra.mxu0 0.0
      %679 = vmatprep.subr.mxu0 0.0
      %680 = vmatpush2.msra.mxu0 0.0
      %681 = vmatprep.subr.mxu0 0.0
      %682 = vmatpush2.msra.mxu0 0.0
      %683 = vmatprep.subr.mxu0 0.0
      %684 = vmatpush2.msra.mxu0 0.0
      %685 = vmatprep.mubr.f32.mxu0 0.0
      %686 = vmatmul.mubr.f32.gmra.mxu0 %v616
      %v687 = vpop.f32.mrf.mxu0
      %v688 = vadd.f32 %v612, %v687
      %v689 = vpop.f32.mrf.mxu0
      %690 = vmatprep.mubr.f32.mxu0 0.0
      %691 = vmatmul.mubr.f32.gmra.mxu0 %v619
      %v692 = vpop.f32.mrf.mxu0
      %v693 = vadd.f32 %v612, %v692
      %v694 = vpop.f32.mrf.mxu0
      %695 = vdwg.mxu0
      %p696 = scmp.eq.s32.totalorder %s23, 0
      // Predicated region
      $region49: #{tpu_custom_call.1} parent=47 // pred_check
        %p697 = pneg %p696
      $region50: #{tpu_custom_call.1} parent=47 // pred_check_branch
        %699 = sbr.rel (%p697) target = $region52
      $region51: #{tpu_custom_call.1} parent=47 // pred_region
        %700 = vst.msk [vmem:[%s391] sm:$0xff] %vm403, %v688
        %701 = vst.msk [vmem:[%s391 + $0x8] sm:$0xff] %vm403, %v693
      $region52: #{tpu_custom_call.1} parent=47 // pred_fallthru
        _
      %p702 = scmp.gt.s32.totalorder %s23, 0
      // Predicated region
      $region53: #{tpu_custom_call.1} parent=47 // pred_check
        %p703 = pneg %p702
      $region54: #{tpu_custom_call.1} parent=47 // pred_check_branch
        %705 = sbr.rel (%p703) target = $region56
      $region55: #{tpu_custom_call.1} parent=47 // pred_region
        %v706 = vld [vmem:[%s391] sm:$0xff]
        %v707 = vld [vmem:[%s391 + $0x8] sm:$0xff]
        %v708 = vadd.f32 %v706, %v688
        %v709 = vadd.f32 %v707, %v693
        %710 = vst.msk [vmem:[%s391] sm:$0xff] %vm403, %v708
        %711 = vst.msk [vmem:[%s391 + $0x8] sm:$0xff] %vm403, %v709
      $region56: #{tpu_custom_call.1} parent=47 // pred_fallthru
        _
      %s712 = smul.u32 2, %s22
      %p713 = scmp.lt.s32.totalorder %s712, 3
      %s714 = scalar_select %p713, %s712, 3
      %s715 = smul.addr %s714, 8
      %s716 = scalar_lea.vmem %s7, %s715
      // Predicated region
      $region57: #{tpu_custom_call.1} parent=47 // pred_check
        %p717 = pneg %p230
      $region58: #{tpu_custom_call.1} parent=47 // pred_check_branch
        %719 = sbr.rel (%p717) target = $region60
      $region59: #{tpu_custom_call.1} parent=47 // pred_region
        %s720 = smul.u32 2, %s22
      $region60: #{tpu_custom_call.1} parent=47 // pred_fallthru
        _
    $region48: #{tpu_custom_call.1} parent=5 // pred_fallthru
      _
    %p721 = scmp.le.s32.totalorder 2, %s13
    // Predicated region
    $region61: #{tpu_custom_call.1} parent=5 // pred_check
      %p722 = pneg %p721
    $region62: #{tpu_custom_call.1} parent=5 // pred_check_branch
      %724 = sbr.rel (%p722) target = $region64
    $region63: #{tpu_custom_call.1} parent=5 // pred_region
      %s725 = ssub.s32 %s13, 2
      // Predicated region
      $region65: #{tpu_custom_call.1} parent=63 // pred_check
        %p726 = pneg %p236
      $region66: #{tpu_custom_call.1} parent=63 // pred_check_branch
        %728 = sbr.rel (%p726) target = $region68
      $region67: #{tpu_custom_call.1} parent=63 // pred_region
        %s729 = smul.u32 2, %s24
        %p730 = scmp.lt.s32.totalorder %s729, 3
        %s731 = scalar_select %p730, %s729, 3
        %s732 = smul.addr %s731, 8
        %s733 = scalar_lea.vmem %s7, %s732
      $region68: #{tpu_custom_call.1} parent=63 // pred_fallthru
        _
    $region64: #{tpu_custom_call.1} parent=5 // pred_fallthru
      _
  $region6: #{tpu_custom_call.1} parent=0 // loop_footer
    %s17 = sadd.s32 1, %s13
  $region7: #{tpu_custom_call.1} parent=0 // loop_footer_branch
    %12 = sbr.rel target = $region3
  $region8: #{tpu_custom_call.1} parent=0 // loop_exit
    _

</llo_original>
